<compile_context>
chip_gen: v7x
topology: tpu7x:2x2x1
jax: 0.10.0
libtpu: 0.0.40
codegen_flags: <defaults>
</compile_context>

<pallas_src>
import functools

import jax
import jax.numpy as jnp
from jax.experimental import pallas as pl
from jax.experimental.pallas import tpu as pltpu


_FUSE_MAX_NODES = 2048   # fused single-kernel path when padded N <= this


# ---------------------------------------------------------------------------
# Helpers
# ---------------------------------------------------------------------------
def _round_up(x, m):
    return ((x + m - 1) // m) * m


def _pick_tile(n, pref):
    """Largest multiple of 128 that divides n and is <= pref (n % 128 == 0)."""
    t = min(pref, n)
    t -= t % 128
    while n % t != 0:
        t -= 128
    return t


def _vmem_limit_bytes():
    """Per-generation VMEM limit: half of physical, capped, with headroom."""
    try:
        cap = int(getattr(pltpu.get_tpu_info(), "vmem_capacity_bytes",
                          128 * 1024 * 1024))
    except Exception:
        cap = 64 * 1024 * 1024
    return min(max(cap // 2, 16 * 1024 * 1024), 48 * 1024 * 1024)


# ---------------------------------------------------------------------------
# Fused whole-forward kernel (small / demo shapes)
# ---------------------------------------------------------------------------
def _gcn_fused_kernel(a_ref, x_ref, seg_ref, invc_ref,
                      w1_ref, b1_ref, w2_ref, b2_ref, w3_ref, b3_ref,
                      wl_ref, bl_ref, o_ref):
    a = a_ref[...]                                            # (N, N) bf16

    # conv1: H = relu(A @ (X @ W1) + b1)
    h = jnp.dot(x_ref[...], w1_ref[...], preferred_element_type=jnp.float32)
    h = jnp.dot(a, h.astype(jnp.bfloat16), preferred_element_type=jnp.float32)
    h = jnp.maximum(h + b1_ref[...], 0.0)

    # conv2: H = relu(A @ (H @ W2) + b2)
    h = jnp.dot(h.astype(jnp.bfloat16), w2_ref[...],
                preferred_element_type=jnp.float32)
    h = jnp.dot(a, h.astype(jnp.bfloat16), preferred_element_type=jnp.float32)
    h = jnp.maximum(h + b2_ref[...], 0.0)

    # conv3: H = A @ (H @ W3) + b3   (no ReLU)
    h = jnp.dot(h.astype(jnp.bfloat16), w3_ref[...],
                preferred_element_type=jnp.float32)
    h = jnp.dot(a, h.astype(jnp.bfloat16), preferred_element_type=jnp.float32)
    h = h + b3_ref[...]

    # global_mean_pool (exact 0/1 segment matrix, f32 1/count); eval dropout = id
    pooled = jnp.dot(seg_ref[...], h, preferred_element_type=jnp.float32)
    pooled = pooled * invc_ref[...]

    # final Linear
    o_ref[...] = (jnp.dot(pooled, wl_ref[...],
                          preferred_element_type=jnp.float32)
                  + bl_ref[...]).astype(o_ref.dtype)


def _gcn_fused(a_bf16, x, seg, invc, params, vmem_limit):
    w1, b1, w2, b2, w3, b3, wl, bl = params
    n = a_bf16.shape[0]
    g = seg.shape[0]
    hid = w1.shape[1]
    n_cls = wl.shape[1]

    w2b = w2.astype(jnp.bfloat16)
    w3b = w3.astype(jnp.bfloat16)

    flops = (2 * n * w1.shape[0] * hid          # X @ W1
             + 3 * 2 * n * n * hid              # 3x A @ H
             + 2 * 2 * n * hid * hid            # H @ W2, H @ W3
             + 2 * g * n * hid + 2 * g * hid * n_cls)
    bytes_accessed = (n * n * 2 + n * w1.shape[0] * 4 + g * n * 4 + g * 4
                      + 2 * hid * hid * 2
                      + (w1.size + b1.size + b2.size + b3.size
                         + wl.size + bl.size) * 4
                      + g * n_cls * 4)

    vmem = pl.BlockSpec(memory_space=pltpu.MemorySpace.VMEM)
    return pl.pallas_call(
        _gcn_fused_kernel,
        out_shape=jax.ShapeDtypeStruct((g, n_cls), jnp.float32),
        in_specs=[vmem] * 12,
        out_specs=vmem,
        compiler_params=pltpu.CompilerParams(vmem_limit_bytes=vmem_limit),
        cost_estimate=pl.CostEstimate(flops=int(flops), transcendentals=0,
                                      bytes_accessed=int(bytes_accessed)),
    )(a_bf16, x, seg, invc, w1, b1, w2b, b2, w3b, b3, wl, bl)


# ---------------------------------------------------------------------------
# Tiled path (large graphs)
# ---------------------------------------------------------------------------
def _feat_transform_kernel(x_ref, w_ref, o_ref):
    # H = X @ W, computed once per layer (hoisted out of the aggregation grid).
    o_ref[...] = jnp.dot(x_ref[...], w_ref[...],
                         preferred_element_type=jnp.float32).astype(o_ref.dtype)


def _feat_transform(x, w, *, tm, vmem_limit):
    n, f = x.shape
    hid = w.shape[1]
    return pl.pallas_call(
        _feat_transform_kernel,
        out_shape=jax.ShapeDtypeStruct((n, hid), jnp.bfloat16),
        grid_spec=pltpu.PrefetchScalarGridSpec(
            num_scalar_prefetch=0,
            grid=(n // tm,),
            in_specs=[pl.BlockSpec((tm, f), lambda i: (i, 0)),
                      pl.BlockSpec((f, hid), lambda i: (0, 0))],
            out_specs=pl.BlockSpec((tm, hid), lambda i: (i, 0)),
        ),
        compiler_params=pltpu.CompilerParams(
            dimension_semantics=("parallel",),
            vmem_limit_bytes=vmem_limit),
    )(x, w)


def _aggregate_kernel(a_ref, h_ref, b_ref, o_ref, acc_ref, *, relu, tk):
    """out_row_tile = [relu](A_row_tile @ H + b), reduced over K tiles.

    H is the full (N, hidden) bf16 transformed-feature matrix, VMEM-resident
    (fetched once), sliced per K step with pl.ds.
    """
    k = pl.program_id(1)

    @pl.when(k == 0)
    def _():
        acc_ref[...] = jnp.zeros_like(acc_ref)

    off = pl.multiple_of(k * tk, tk)
    acc_ref[...] += jnp.dot(a_ref[...], h_ref[pl.ds(off, tk), :],
                            preferred_element_type=jnp.float32)

    @pl.when(k == pl.num_programs(1) - 1)
    def _():
        out = acc_ref[...] + b_ref[...]
        if relu:
            out = jnp.maximum(out, 0.0)
        o_ref[...] = out.astype(o_ref.dtype)


def _aggregate(a_bf16, h_bf16, b, *, relu, tm, tk, vmem_limit):
    n = a_bf16.shape[0]
    hid = h_bf16.shape[1]
    grid = (n // tm, n // tk)

    flops = 2 * n * n * hid
    bytes_accessed = n * n * 2 + n * hid * 2 + hid * 4 + n * hid * 2

    return pl.pallas_call(
        functools.partial(_aggregate_kernel, relu=relu, tk=tk),
        out_shape=jax.ShapeDtypeStruct((n, hid), jnp.bfloat16),
        grid_spec=pltpu.PrefetchScalarGridSpec(
            num_scalar_prefetch=0,
            grid=grid,
            in_specs=[
                pl.BlockSpec((tm, tk), lambda i, k: (i, k)),   # A tile (bf16)
                pl.BlockSpec((n, hid), lambda i, k: (0, 0)),   # H resident (bf16)
                pl.BlockSpec((1, hid), lambda i, k: (0, 0)),   # bias (f32)
            ],
            out_specs=pl.BlockSpec((tm, hid), lambda i, k: (i, 0)),
            scratch_shapes=[pltpu.VMEM((tm, hid), jnp.float32)],
        ),
        compiler_params=pltpu.CompilerParams(
            dimension_semantics=("parallel", "arbitrary"),
            vmem_limit_bytes=vmem_limit),
        cost_estimate=pl.CostEstimate(flops=int(flops), transcendentals=0,
                                      bytes_accessed=int(bytes_accessed)),
    )(a_bf16, h_bf16, b)


def _pool_lin_kernel(seg_ref, h_ref, invc_ref, wl_ref, bl_ref, o_ref, acc_ref):
    """pooled = (Seg @ H) / counts (accumulated over row tiles); out = pooled @ Wl + bl."""
    k = pl.program_id(0)

    @pl.when(k == 0)
    def _():
        acc_ref[...] = jnp.zeros_like(acc_ref)

    acc_ref[...] += jnp.dot(seg_ref[...], h_ref[...],
                            preferred_element_type=jnp.float32)

    @pl.when(k == pl.num_programs(0) - 1)
    def _():
        pooled = acc_ref[...] * invc_ref[...]
        # dropout(p=0.5, training=False) -> identity
        o_ref[...] = (jnp.dot(pooled, wl_ref[...],
                              preferred_element_type=jnp.float32)
                      + bl_ref[...]).astype(o_ref.dtype)


def _pool_linear(seg_bf16, h3, invc, wl, bl, *, tk, vmem_limit):
    g, n = seg_bf16.shape
    hid = h3.shape[1]
    n_cls = wl.shape[1]
    return pl.pallas_call(
        _pool_lin_kernel,
        out_shape=jax.ShapeDtypeStruct((g, n_cls), jnp.float32),
        grid_spec=pltpu.PrefetchScalarGridSpec(
            num_scalar_prefetch=0,
            grid=(n // tk,),
            in_specs=[
                pl.BlockSpec((g, tk), lambda k: (0, k)),       # segment tile (bf16 0/1)
                pl.BlockSpec((tk, hid), lambda k: (k, 0)),     # H3 tile (bf16)
                pl.BlockSpec((g, 1), lambda k: (0, 0)),        # 1/count (f32)
                pl.BlockSpec((hid, n_cls), lambda k: (0, 0)),  # W_lin
                pl.BlockSpec((1, n_cls), lambda k: (0, 0)),    # b_lin
            ],
            out_specs=pl.BlockSpec((g, n_cls), lambda k: (0, 0)),
            scratch_shapes=[pltpu.VMEM((g, hid), jnp.float32)],
        ),
        compiler_params=pltpu.CompilerParams(
            dimension_semantics=("arbitrary",),
            vmem_limit_bytes=vmem_limit),
    )(seg_bf16, h3, invc, wl, bl)


# ---------------------------------------------------------------------------
# Forward
# ---------------------------------------------------------------------------
def gcn_forward(x, edge_index, batch, num_graphs, params):
    """x: [N, F] f32, edge_index: [2, E] i32 (row 0 = src, row 1 = dst), batch: [N] i32."""
    n = x.shape[0]
    src, dst = edge_index[0], edge_index[1]

    # Dense symmetric-normalized adjacency, matching GCNConv defaults:
    #  - duplicate edges sum their unit weights,
    #  - add_remaining_self_loops: keep existing self-loop weight, add 1.0
    #    only to nodes without a self-loop,
    #  - A_norm[i, j] = d^-1/2[i] * A[i, j] * d^-1/2[j].
    adj = jnp.zeros((n, n), jnp.float32).at[dst, src].add(1.0)
    diag = jnp.diagonal(adj)
    adj = adj + jnp.diag(jnp.where(diag > 0.0, 0.0, 1.0))
    deg = adj.sum(axis=1)
    dinv = jnp.where(deg > 0.0, jax.lax.rsqrt(deg), 0.0)
    a_norm = adj * dinv[:, None] * dinv[None, :]

    # Exact 0/1 per-graph segment matrix + 1/count (global_mean_pool).
    seg = (batch[None, :] == jnp.arange(num_graphs)[:, None]).astype(jnp.float32)
    invc = 1.0 / jnp.maximum(seg.sum(axis=1, keepdims=True), 1.0)

    w1, b1, w2, b2, w3, b3, wl, bl = params

    # Pad node count to a lane-aligned multiple of 128; padded rows/cols of A
    # and seg are zero, so padded nodes never contribute to real outputs.
    np_ = _round_up(n, 128)
    if np_ != n:
        pad = np_ - n
        a_norm = jnp.pad(a_norm, ((0, pad), (0, pad)))
        x = jnp.pad(x, ((0, pad), (0, 0)))
        seg = jnp.pad(seg, ((0, 0), (0, pad)))

    a_bf16 = a_norm.astype(jnp.bfloat16)     # halve bytes of the dominant operand
    vmem_limit = _vmem_limit_bytes()

    if np_ <= _FUSE_MAX_NODES:
        # Whole forward fused in one kernel: A (bf16), all weights, and the
        # activation ping-pong stay VMEM-resident; no intermediate HBM traffic.
        return _gcn_fused(a_bf16, x, seg, invc, params, vmem_limit)

    # --- Tiled fallback for large graphs ----------------------------------
    # np_ > 2048 and tm <= 512 guarantees >= 4 row tiles (2-TC friendly on v7x).
    tm = _pick_tile(np_, 512)
    tk = _pick_tile(np_, 2048)

    w2b = w2.astype(jnp.bfloat16)
    w3b = w3.astype(jnp.bfloat16)
    seg_b = seg.astype(jnp.bfloat16)          # 0/1 values: exact in bf16

    h = _feat_transform(x, w1, tm=tm, vmem_limit=vmem_limit)
    h = _aggregate(a_bf16, h, b1, relu=True, tm=tm, tk=tk, vmem_limit=vmem_limit)
    h = _feat_transform(h, w2b, tm=tm, vmem_limit=vmem_limit)
    h = _aggregate(a_bf16, h, b2, relu=True, tm=tm, tk=tk, vmem_limit=vmem_limit)
    h = _feat_transform(h, w3b, tm=tm, vmem_limit=vmem_limit)
    h = _aggregate(a_bf16, h, b3, relu=False, tm=tm, tk=tk, vmem_limit=vmem_limit)
    return _pool_linear(seg_b, h, invc, wl, bl, tk=tk, vmem_limit=vmem_limit)


# ---------------------------------------------------------------------------
# Pure-JAX f32 reference (eval-mode PyTorch semantics) + param init
# ---------------------------------------------------------------------------
def gcn_reference(x, edge_index, batch, num_graphs, params):
    n = x.shape[0]
    src, dst = edge_index[0], edge_index[1]
    adj = jnp.zeros((n, n), jnp.float32).at[dst, src].add(1.0)
    diag = jnp.diagonal(adj)
    adj = adj + jnp.diag(jnp.where(diag > 0.0, 0.0, 1.0))
    deg = adj.sum(axis=1)
    dinv = jnp.where(deg > 0.0, jax.lax.rsqrt(deg), 0.0)
    a = adj * dinv[:, None] * dinv[None, :]

    w1, b1, w2, b2, w3, b3, wl, bl = params
    h = jnp.maximum(a @ (x @ w1) + b1, 0.0)
    h = jnp.maximum(a @ (h @ w2) + b2, 0.0)
    h = a @ (h @ w3) + b3
    seg = (batch[None, :] == jnp.arange(num_graphs)[:, None]).astype(jnp.float32)
    pooled = (seg @ h) / jnp.maximum(seg.sum(axis=1, keepdims=True), 1.0)
    return pooled @ wl + bl


def init_params(key, n_node_features=4, hidden=128, n_cls=2):
    ks = jax.random.split(key, 8)

    def lin_w(k, fan_in, fan_out):
        scale = 1.0 / jnp.sqrt(jnp.float32(fan_in))
        return jax.random.uniform(k, (fan_in, fan_out), jnp.float32, -scale, scale)

    def lin_b(k, fan_in, fan_out):
        scale = 1.0 / jnp.sqrt(jnp.float32(fan_in))
        return jax.random.uniform(k, (1, fan_out), jnp.float32, -scale, scale)

    w1 = lin_w(ks[0], n_node_features, hidden)
    b1 = lin_b(ks[1], n_node_features, hidden)
    w2 = lin_w(ks[2], hidden, hidden)
    b2 = lin_b(ks[3], hidden, hidden)
    w3 = lin_w(ks[4], hidden, hidden)
    b3 = lin_b(ks[5], hidden, hidden)
    wl = lin_w(ks[6], hidden, n_cls)          # stored as [hidden, n_cls] (W^T)
    bl = lin_b(ks[7], hidden, n_cls)
    return (w1, b1, w2, b2, w3, b3, wl, bl)


if __name__ == "__main__":
    key = jax.random.PRNGKey(0)
    k_x, k_p = jax.random.split(key)

    # two graphs of 24 nodes each, bidirectional ring edges
    n_per, num_graphs = 24, 2
    n_nodes = n_per * num_graphs
    n_node_features, hidden, n_cls = 4, 128, 2

    src_list, dst_list = [], []
    for g in range(num_graphs):
        off = g * n_per
        for i in range(n_per):
            u, v = off + i, off + (i + 1) % n_per
            src_list += [u, v]
            dst_list += [v, u]
    edge_index = jnp.array([src_list, dst_list], dtype=jnp.int32)         # [2, 96]
    batch = jnp.repeat(jnp.arange(num_graphs, dtype=jnp.int32), n_per)    # [48]

    x = jax.random.normal(k_x, (n_nodes, n_node_features), jnp.float32)
    params = init_params(k_p, n_node_features, hidden, n_cls)

    fwd = jax.jit(gcn_forward, static_argnums=(3,))
    out = fwd(x, edge_index, batch, num_graphs, params)
    jax.block_until_ready(out)
    assert out.shape == (num_graphs, n_cls)

    ref = gcn_reference(x, edge_index, batch, num_graphs, params)
    assert jnp.allclose(out, ref, rtol=1e-1, atol=1e-1), (out, ref)
    print("KERNEL_OK")
</pallas_src>

<mosaic_0001>
module attributes {stable_mosaic.version = 11 : i64} {
  func.func private @main(%arg0: i32) attributes {dimension_semantics = [#tpu.dimension_semantics<core_parallel>], iteration_bounds = array<i64: 2>, tpu.core_type = #tpu.core_type<sc_scalar_subcore>, window_params = []} {
    return
  }
}

module attributes {stable_mosaic.version = 11 : i64} {
  func.func private @main(%arg0: i32) attributes {dimension_semantics = [#tpu.dimension_semantics<core_parallel>], iteration_bounds = array<i64: 2>, tpu.core_type = #tpu.core_type<sc_scalar_subcore>, window_params = []} {
    return
  }
}

module attributes {stable_mosaic.version = 11 : i64} {
  func.func @_gcn_fused_kernel(%arg0: memref<128x128xbf16, #tpu.memory_space<vmem>>, %arg1: memref<128x4xf32, #tpu.memory_space<vmem>>, %arg2: memref<2x128xf32, #tpu.memory_space<vmem>>, %arg3: memref<2x1xf32, #tpu.memory_space<vmem>>, %arg4: memref<4x128xf32, #tpu.memory_space<vmem>>, %arg5: memref<1x128xf32, #tpu.memory_space<vmem>>, %arg6: memref<128x128xbf16, #tpu.memory_space<vmem>>, %arg7: memref<1x128xf32, #tpu.memory_space<vmem>>, %arg8: memref<128x128xbf16, #tpu.memory_space<vmem>>, %arg9: memref<1x128xf32, #tpu.memory_space<vmem>>, %arg10: memref<128x2xf32, #tpu.memory_space<vmem>>, %arg11: memref<1x2xf32, #tpu.memory_space<vmem>>, %arg12: memref<2x2xf32, #tpu.memory_space<vmem>>) attributes {dimension_semantics = [], scalar_prefetch = 0 : i64, scratch_operands = 0 : i64, tpu.core_type = #tpu.core_type<tc>} {
    %c0 = arith.constant 0 : index
    %c0_0 = arith.constant 0 : index
    %0 = vector.load %arg0[%c0, %c0_0] : memref<128x128xbf16, #tpu.memory_space<vmem>>, vector<128x128xbf16>
    %c0_1 = arith.constant 0 : index
    %c0_2 = arith.constant 0 : index
    %1 = vector.load %arg1[%c0_1, %c0_2] : memref<128x4xf32, #tpu.memory_space<vmem>>, vector<128x4xf32>
    %c0_3 = arith.constant 0 : index
    %c0_4 = arith.constant 0 : index
    %2 = vector.load %arg4[%c0_3, %c0_4] : memref<4x128xf32, #tpu.memory_space<vmem>>, vector<4x128xf32>
    %cst = arith.constant dense<0.000000e+00> : vector<128x128xf32>
    %3 = tpu.matmul %1, %2, %cst {dimension_numbers = #tpu.dot_dimension_numbers<[1], [0], [0], [1], [0, 0, 1, 1], [], []>} : vector<128x4xf32>, vector<4x128xf32>, vector<128x128xf32> -> vector<128x128xf32>
    %4 = arith.truncf %3 : vector<128x128xf32> to vector<128x128xbf16>
    %cst_5 = arith.constant dense<0.000000e+00> : vector<128x128xf32>
    %5 = tpu.matmul %0, %4, %cst_5 {dimension_numbers = #tpu.dot_dimension_numbers<[1], [0], [0], [1], [0, 0, 1, 1], [], []>} : vector<128x128xbf16>, vector<128x128xbf16>, vector<128x128xf32> -> vector<128x128xf32>
    %c0_6 = arith.constant 0 : index
    %c0_7 = arith.constant 0 : index
    %6 = vector.load %arg5[%c0_6, %c0_7] : memref<1x128xf32, #tpu.memory_space<vmem>>, vector<1x128xf32>
    %7 = vector.broadcast %6 : vector<1x128xf32> to vector<128x128xf32>
    %8 = arith.addf %5, %7 : vector<128x128xf32>
    %cst_8 = arith.constant 0.000000e+00 : f32
    %9 = vector.broadcast %cst_8 : f32 to vector<128x128xf32>
    %10 = arith.maximumf %8, %9 : vector<128x128xf32>
    %11 = arith.truncf %10 : vector<128x128xf32> to vector<128x128xbf16>
    %c0_9 = arith.constant 0 : index
    %c0_10 = arith.constant 0 : index
    %12 = vector.load %arg6[%c0_9, %c0_10] : memref<128x128xbf16, #tpu.memory_space<vmem>>, vector<128x128xbf16>
    %cst_11 = arith.constant dense<0.000000e+00> : vector<128x128xf32>
    %13 = tpu.matmul %11, %12, %cst_11 {dimension_numbers = #tpu.dot_dimension_numbers<[1], [0], [0], [1], [0, 0, 1, 1], [], []>} : vector<128x128xbf16>, vector<128x128xbf16>, vector<128x128xf32> -> vector<128x128xf32>
    %14 = arith.truncf %13 : vector<128x128xf32> to vector<128x128xbf16>
    %cst_12 = arith.constant dense<0.000000e+00> : vector<128x128xf32>
    %15 = tpu.matmul %0, %14, %cst_12 {dimension_numbers = #tpu.dot_dimension_numbers<[1], [0], [0], [1], [0, 0, 1, 1], [], []>} : vector<128x128xbf16>, vector<128x128xbf16>, vector<128x128xf32> -> vector<128x128xf32>
    %c0_13 = arith.constant 0 : index
    %c0_14 = arith.constant 0 : index
    %16 = vector.load %arg7[%c0_13, %c0_14] : memref<1x128xf32, #tpu.memory_space<vmem>>, vector<1x128xf32>
    %17 = vector.broadcast %16 : vector<1x128xf32> to vector<128x128xf32>
    %18 = arith.addf %15, %17 : vector<128x128xf32>
    %cst_15 = arith.constant 0.000000e+00 : f32
    %19 = vector.broadcast %cst_15 : f32 to vector<128x128xf32>
    %20 = arith.maximumf %18, %19 : vector<128x128xf32>
    %21 = arith.truncf %20 : vector<128x128xf32> to vector<128x128xbf16>
    %c0_16 = arith.constant 0 : index
    %c0_17 = arith.constant 0 : index
    %22 = vector.load %arg8[%c0_16, %c0_17] : memref<128x128xbf16, #tpu.memory_space<vmem>>, vector<128x128xbf16>
    %cst_18 = arith.constant dense<0.000000e+00> : vector<128x128xf32>
    %23 = tpu.matmul %21, %22, %cst_18 {dimension_numbers = #tpu.dot_dimension_numbers<[1], [0], [0], [1], [0, 0, 1, 1], [], []>} : vector<128x128xbf16>, vector<128x128xbf16>, vector<128x128xf32> -> vector<128x128xf32>
    %24 = arith.truncf %23 : vector<128x128xf32> to vector<128x128xbf16>
    %cst_19 = arith.constant dense<0.000000e+00> : vector<128x128xf32>
    %25 = tpu.matmul %0, %24, %cst_19 {dimension_numbers = #tpu.dot_dimension_numbers<[1], [0], [0], [1], [0, 0, 1, 1], [], []>} : vector<128x128xbf16>, vector<128x128xbf16>, vector<128x128xf32> -> vector<128x128xf32>
    %c0_20 = arith.constant 0 : index
    %c0_21 = arith.constant 0 : index
    %26 = vector.load %arg9[%c0_20, %c0_21] : memref<1x128xf32, #tpu.memory_space<vmem>>, vector<1x128xf32>
    %27 = vector.broadcast %26 : vector<1x128xf32> to vector<128x128xf32>
    %28 = arith.addf %25, %27 : vector<128x128xf32>
    %c0_22 = arith.constant 0 : index
    %c0_23 = arith.constant 0 : index
    %29 = vector.load %arg2[%c0_22, %c0_23] : memref<2x128xf32, #tpu.memory_space<vmem>>, vector<2x128xf32>
    %cst_24 = arith.constant dense<0.000000e+00> : vector<2x128xf32>
    %30 = tpu.matmul %29, %28, %cst_24 {dimension_numbers = #tpu.dot_dimension_numbers<[1], [0], [0], [1], [0, 0, 1, 1], [], []>} : vector<2x128xf32>, vector<128x128xf32>, vector<2x128xf32> -> vector<2x128xf32>
    %c0_25 = arith.constant 0 : index
    %c0_26 = arith.constant 0 : index
    %31 = vector.load %arg3[%c0_25, %c0_26] : memref<2x1xf32, #tpu.memory_space<vmem>>, vector<2x1xf32>
    %32 = vector.broadcast %31 : vector<2x1xf32> to vector<2x128xf32>
    %33 = arith.mulf %30, %32 : vector<2x128xf32>
    %c0_27 = arith.constant 0 : index
    %c0_28 = arith.constant 0 : index
    %34 = vector.load %arg10[%c0_27, %c0_28] : memref<128x2xf32, #tpu.memory_space<vmem>>, vector<128x2xf32>
    %cst_29 = arith.constant dense<0.000000e+00> : vector<2x2xf32>
    %35 = tpu.matmul %33, %34, %cst_29 {dimension_numbers = #tpu.dot_dimension_numbers<[1], [0], [0], [1], [0, 0, 1, 1], [], []>} : vector<2x128xf32>, vector<128x2xf32>, vector<2x2xf32> -> vector<2x2xf32>
    %c0_30 = arith.constant 0 : index
    %c0_31 = arith.constant 0 : index
    %36 = vector.load %arg11[%c0_30, %c0_31] : memref<1x2xf32, #tpu.memory_space<vmem>>, vector<1x2xf32>
    %37 = vector.broadcast %36 : vector<1x2xf32> to vector<2x2xf32>
    %38 = arith.addf %35, %37 : vector<2x2xf32>
    %c0_32 = arith.constant 0 : index
    %c0_33 = arith.constant 0 : index
    %39 = vector.load %arg12[%c0_32, %c0_33] : memref<2x2xf32, #tpu.memory_space<vmem>>, vector<2x2xf32>
    tpu.vector_store %arg12[%c0_32, %c0_33], %38 {strides = array<i32>} : memref<2x2xf32, #tpu.memory_space<vmem>>, vector<2x2xf32>,
    return
  }
}

</mosaic_0001>

<llo_original>
// kernel: gcn_forward.1
$region0: #{gcn_forward.1}
  #allocation0 [shape = 'u32[]', space=smem, size = 0x4, offset = 0x4, fixed_abs, tag = 'smem constant byte address 0x4 - core index']
  #allocation1 [shape = 'u32[144,128]{1,0:T(1,128)}', space=vmem, size = 0x12000, scoped, tag = 'internal scratch']
  %s0 = inlined_call_operand.vmem [shape: bf16[128,128], index: 0, kind: input, shape index: {}]
  %s1 = inlined_call_operand.vmem [shape: f32[128,4], index: 1, kind: input, shape index: {}]
  %s2 = inlined_call_operand.vmem [shape: f32[2,128], index: 2, kind: input, shape index: {}]
  %s3 = inlined_call_operand.vmem [shape: f32[2,1], index: 3, kind: input, shape index: {}]
  %s4 = inlined_call_operand.vmem [shape: f32[4,128], index: 4, kind: input, shape index: {}]
  %s5 = inlined_call_operand.vmem [shape: f32[1,128], index: 5, kind: input, shape index: {}]
  %s6 = inlined_call_operand.vmem [shape: bf16[128,128], index: 6, kind: input, shape index: {}]
  %s7 = inlined_call_operand.vmem [shape: f32[1,128], index: 7, kind: input, shape index: {}]
  %s8 = inlined_call_operand.vmem [shape: bf16[128,128], index: 8, kind: input, shape index: {}]
  %s9 = inlined_call_operand.vmem [shape: f32[1,128], index: 9, kind: input, shape index: {}]
  %s10 = inlined_call_operand.vmem [shape: f32[128,2], index: 10, kind: input, shape index: {}]
  %s11 = inlined_call_operand.vmem [shape: f32[1,2], index: 11, kind: input, shape index: {}]
  %s12 = inlined_call_operand.hbm [shape: f32[2,2], index: 12, kind: output, shape index: {}]
  %s13 = sld [smem:[#allocation0]]
  $region58: #{gcn_forward.1} parent=0
    _
  %s15 = ssub.s32 1, %s13
  %s16 = scalar_select 0, %s15, %s13
  $region1: #{gcn_forward.1} parent=0
    #allocation2 [shape = 'u8[1024]{0}', space=vmem, size = 0x400, scoped, tag = 'output window, operand 0, single buffered']
    #allocation3 [shape = 's32[1]{0}', space=sflag, size = 0x4, scoped, tag = 'scoped memory for gcn_forward.1']
    %17 = vsyncpa [#allocation3], 0
    // Predicated region
    $region2: #{gcn_forward.1} parent=1 // pred_check
      _
    $region3: #{gcn_forward.1} parent=1 // pred_check_branch
      %19 = sbr.rel (0) target = $region5
    $region4: #{gcn_forward.1} parent=1 // pred_region
      _
    $region5: #{gcn_forward.1} parent=1 // pred_fallthru
      _
    // Predicated region
    $region6: #{gcn_forward.1} parent=1 // pred_check
      _
    $region7: #{gcn_forward.1} parent=1 // pred_check_branch
      %21 = sbr.rel (0) target = $region9
    $region8: #{gcn_forward.1} parent=1 // pred_region
      _
    $region9: #{gcn_forward.1} parent=1 // pred_fallthru
      _
    // Predicated region
    $region10: #{gcn_forward.1} parent=1 // pred_check
      _
    $region11: #{gcn_forward.1} parent=1 // pred_check_branch
      %23 = sbr.rel (0) target = $region13
    $region12: #{gcn_forward.1} parent=1 // pred_region
      _
    $region13: #{gcn_forward.1} parent=1 // pred_fallthru
      _
    // Predicated region
    $region14: #{gcn_forward.1} parent=1 // pred_check
      _
    $region15: #{gcn_forward.1} parent=1 // pred_check_branch
      %25 = sbr.rel (0) target = $region17
    $region16: #{gcn_forward.1} parent=1 // pred_region
      _
    $region17: #{gcn_forward.1} parent=1 // pred_fallthru
      _
    // Predicated region
    $region18: #{gcn_forward.1} parent=1 // pred_check
      _
    $region19: #{gcn_forward.1} parent=1 // pred_check_branch
      %27 = sbr.rel (0) target = $region21
    $region20: #{gcn_forward.1} parent=1 // pred_region
      _
    $region21: #{gcn_forward.1} parent=1 // pred_fallthru
      _
    // Predicated region
    $region22: #{gcn_forward.1} parent=1 // pred_check
      _
    $region23: #{gcn_forward.1} parent=1 // pred_check_branch
      %29 = sbr.rel (0) target = $region25
    $region24: #{gcn_forward.1} parent=1 // pred_region
      _
    $region25: #{gcn_forward.1} parent=1 // pred_fallthru
      _
    // Predicated region
    $region26: #{gcn_forward.1} parent=1 // pred_check
      _
    $region27: #{gcn_forward.1} parent=1 // pred_check_branch
      %31 = sbr.rel (0) target = $region29
    $region28: #{gcn_forward.1} parent=1 // pred_region
      _
    $region29: #{gcn_forward.1} parent=1 // pred_fallthru
      _
    // Predicated region
    $region30: #{gcn_forward.1} parent=1 // pred_check
      _
    $region31: #{gcn_forward.1} parent=1 // pred_check_branch
      %33 = sbr.rel (0) target = $region33
    $region32: #{gcn_forward.1} parent=1 // pred_region
      _
    $region33: #{gcn_forward.1} parent=1 // pred_fallthru
      _
    // Predicated region
    $region34: #{gcn_forward.1} parent=1 // pred_check
      _
    $region35: #{gcn_forward.1} parent=1 // pred_check_branch
      %35 = sbr.rel (0) target = $region37
    $region36: #{gcn_forward.1} parent=1 // pred_region
      _
    $region37: #{gcn_forward.1} parent=1 // pred_fallthru
      _
    // Predicated region
    $region38: #{gcn_forward.1} parent=1 // pred_check
      _
    $region39: #{gcn_forward.1} parent=1 // pred_check_branch
      %37 = sbr.rel (0) target = $region41
    $region40: #{gcn_forward.1} parent=1 // pred_region
      _
    $region41: #{gcn_forward.1} parent=1 // pred_fallthru
      _
    // Predicated region
    $region42: #{gcn_forward.1} parent=1 // pred_check
      _
    $region43: #{gcn_forward.1} parent=1 // pred_check_branch
      %39 = sbr.rel (0) target = $region45
    $region44: #{gcn_forward.1} parent=1 // pred_region
      _
    $region45: #{gcn_forward.1} parent=1 // pred_fallthru
      _
    // Predicated region
    $region46: #{gcn_forward.1} parent=1 // pred_check
      _
    $region47: #{gcn_forward.1} parent=1 // pred_check_branch
      %41 = sbr.rel (0) target = $region49
    $region48: #{gcn_forward.1} parent=1 // pred_region
      _
    $region49: #{gcn_forward.1} parent=1 // pred_fallthru
      _
    %v43 = vld [vmem:[%s0] sm:$0xf]
    %v44 = vld [vmem:[%s0 + $0x4] sm:$0xf]
    %v45 = vld [vmem:[%s0 + $0x8] sm:$0xf]
    %v46 = vld [vmem:[%s0 + $0xc] sm:$0xf]
    %v47 = vld [vmem:[%s0 + $0x10] sm:$0xf]
    %v48 = vld [vmem:[%s0 + $0x14] sm:$0xf]
    %v49 = vld [vmem:[%s0 + $0x18] sm:$0xf]
    %v50 = vld [vmem:[%s0 + $0x1c] sm:$0xf]
    %v51 = vld [vmem:[%s0 + $0x20] sm:$0xf]
    %v52 = vld [vmem:[%s0 + $0x24] sm:$0xf]
    %v53 = vld [vmem:[%s0 + $0x28] sm:$0xf]
    %v54 = vld [vmem:[%s0 + $0x2c] sm:$0xf]
    %v55 = vld [vmem:[%s0 + $0x30] sm:$0xf]
    %v56 = vld [vmem:[%s0 + $0x34] sm:$0xf]
    %v57 = vld [vmem:[%s0 + $0x38] sm:$0xf]
    %v58 = vld [vmem:[%s0 + $0x3c] sm:$0xf]
    %v59 = vld [vmem:[%s1] sm:$0xff]
    %v60 = vld [vmem:[%s1 + $0x8] sm:$0xff]
    %v61 = vld [vmem:[%s1 + $0x10] sm:$0xff]
    %v62 = vld [vmem:[%s1 + $0x18] sm:$0xff]
    %v63 = vld [vmem:[%s1 + $0x20] sm:$0xff]
    %v64 = vld [vmem:[%s1 + $0x28] sm:$0xff]
    %v65 = vld [vmem:[%s1 + $0x30] sm:$0xff]
    %v66 = vld [vmem:[%s1 + $0x38] sm:$0xff]
    %v67 = vld [vmem:[%s1 + $0x40] sm:$0xff]
    %v68 = vld [vmem:[%s1 + $0x48] sm:$0xff]
    %v69 = vld [vmem:[%s1 + $0x50] sm:$0xff]
    %v70 = vld [vmem:[%s1 + $0x58] sm:$0xff]
    %v71 = vld [vmem:[%s1 + $0x60] sm:$0xff]
    %v72 = vld [vmem:[%s1 + $0x68] sm:$0xff]
    %v73 = vld [vmem:[%s1 + $0x70] sm:$0xff]
    %v74 = vld [vmem:[%s1 + $0x78] sm:$0xff]
    %v75 = vld [vmem:[%s4] sm:$0xf]
    %vm76 = vcmask 31744
    %v78 = vsel %vm76, %v59, 0
    %v81 = vsel %vm76, %v60, 0
    %v84 = vsel %vm76, %v61, 0
    %v87 = vsel %vm76, %v62, 0
    %v90 = vsel %vm76, %v63, 0
    %v93 = vsel %vm76, %v64, 0
    %v96 = vsel %vm76, %v65, 0
    %v99 = vsel %vm76, %v66, 0
    %v102 = vsel %vm76, %v67, 0
    %v105 = vsel %vm76, %v68, 0
    %v108 = vsel %vm76, %v69, 0
    %v111 = vsel %vm76, %v70, 0
    %v114 = vsel %vm76, %v71, 0
    %v117 = vsel %vm76, %v72, 0
    %v120 = vsel %vm76, %v73, 0
    %v123 = vsel %vm76, %v74, 0
    %vm125 = vcmask 1043456
    %v127 = vsel %vm125, %v75, 0
    %129 = vmatprep.subr.mxu0 0.0
    %130 = vmatpush1.msra.mxu0 %v127
    %131 = vmatprep.subr.mxu0 0.0
    %132 = vmatpush1.msra.mxu0 0.0
    %133 = vmatprep.subr.mxu0 0.0
    %134 = vmatpush1.msra.mxu0 0.0
    %135 = vmatprep.subr.mxu0 0.0
    %136 = vmatpush1.msra.mxu0 0.0
    %137 = vmatprep.subr.mxu0 0.0
    %138 = vmatpush1.msra.mxu0 0.0
    %139 = vmatprep.subr.mxu0 0.0
    %140 = vmatpush1.msra.mxu0 0.0
    %141 = vmatprep.subr.mxu0 0.0
    %142 = vmatpush1.msra.mxu0 0.0
    %143 = vmatprep.subr.mxu0 0.0
    %144 = vmatpush1.msra.mxu0 0.0
    %145 = vmatprep.subr.mxu0 0.0
    %146 = vmatpush1.msra.mxu0 0.0
    %147 = vmatprep.subr.mxu0 0.0
    %148 = vmatpush1.msra.mxu0 0.0
    %149 = vmatprep.subr.mxu0 0.0
    %150 = vmatpush1.msra.mxu0 0.0
    %151 = vmatprep.subr.mxu0 0.0
    %152 = vmatpush1.msra.mxu0 0.0
    %153 = vmatprep.subr.mxu0 0.0
    %154 = vmatpush1.msra.mxu0 0.0
    %155 = vmatprep.subr.mxu0 0.0
    %156 = vmatpush1.msra.mxu0 0.0
    %157 = vmatprep.subr.mxu0 0.0
    %158 = vmatpush1.msra.mxu0 0.0
    %159 = vmatprep.subr.mxu0 0.0
    %160 = vmatpush1.msra.mxu0 0.0
    %161 = vmatprep.subr.mxu0 0.0
    %162 = vmatpush1.msra.mxu0 0.0
    %163 = vmatprep.subr.mxu0 0.0
    %164 = vmatpush1.msra.mxu0 0.0
    %165 = vmatprep.subr.mxu0 0.0
    %166 = vmatpush1.msra.mxu0 0.0
    %167 = vmatprep.subr.mxu0 0.0
    %168 = vmatpush1.msra.mxu0 0.0
    %169 = vmatprep.subr.mxu0 0.0
    %170 = vmatpush1.msra.mxu0 0.0
    %171 = vmatprep.subr.mxu0 0.0
    %172 = vmatpush1.msra.mxu0 0.0
    %173 = vmatprep.subr.mxu0 0.0
    %174 = vmatpush1.msra.mxu0 0.0
    %175 = vmatprep.subr.mxu0 0.0
    %176 = vmatpush1.msra.mxu0 0.0
    %177 = vmatprep.subr.mxu0 0.0
    %178 = vmatpush1.msra.mxu0 0.0
    %179 = vmatprep.subr.mxu0 0.0
    %180 = vmatpush1.msra.mxu0 0.0
    %181 = vmatprep.subr.mxu0 0.0
    %182 = vmatpush1.msra.mxu0 0.0
    %183 = vmatprep.subr.mxu0 0.0
    %184 = vmatpush1.msra.mxu0 0.0
    %185 = vmatprep.subr.mxu0 0.0
    %186 = vmatpush1.msra.mxu0 0.0
    %187 = vmatprep.subr.mxu0 0.0
    %188 = vmatpush1.msra.mxu0 0.0
    %189 = vmatprep.subr.mxu0 0.0
    %190 = vmatpush1.msra.mxu0 0.0
    %191 = vmatprep.subr.mxu0 0.0
    %192 = vmatpush1.msra.mxu0 0.0
    %193 = vmatprep.mubr.f32.mxu0 0.0
    %194 = vmatmul.mubr.f32.gmra.mrb[0].mxu0 %v78
    %v195 = vpop.f32.mrb[0].mxu0
    %v196 = vadd.f32 0.0, %v195
    %v197 = vpop.f32.mrb[0].mxu0
    %198 = vmatprep.mubr.f32.mxu0 0.0
    %199 = vmatmul.mubr.f32.gmra.mrb[0].mxu0 %v81
    %v200 = vpop.f32.mrb[0].mxu0
    %v201 = vadd.f32 0.0, %v200
    %v202 = vpop.f32.mrb[0].mxu0
    %203 = vmatprep.mubr.f32.mxu0 0.0
    %204 = vmatmul.mubr.f32.gmra.mrb[0].mxu0 %v84
    %v205 = vpop.f32.mrb[0].mxu0
    %v206 = vadd.f32 0.0, %v205
    %v207 = vpop.f32.mrb[0].mxu0
    %208 = vmatprep.mubr.f32.mxu0 0.0
    %209 = vmatmul.mubr.f32.gmra.mrb[0].mxu0 %v87
    %v210 = vpop.f32.mrb[0].mxu0
    %v211 = vadd.f32 0.0, %v210
    %v212 = vpop.f32.mrb[0].mxu0
    %213 = vmatprep.mubr.f32.mxu0 0.0
    %214 = vmatmul.mubr.f32.gmra.mrb[0].mxu0 %v90
    %v215 = vpop.f32.mrb[0].mxu0
    %v216 = vadd.f32 0.0, %v215
    %v217 = vpop.f32.mrb[0].mxu0
    %218 = vmatprep.mubr.f32.mxu0 0.0
    %219 = vmatmul.mubr.f32.gmra.mrb[0].mxu0 %v93
    %v220 = vpop.f32.mrb[0].mxu0
    %v221 = vadd.f32 0.0, %v220
    %v222 = vpop.f32.mrb[0].mxu0
    %223 = vmatprep.mubr.f32.mxu0 0.0
    %224 = vmatmul.mubr.f32.gmra.mrb[0].mxu0 %v96
    %v225 = vpop.f32.mrb[0].mxu0
    %v226 = vadd.f32 0.0, %v225
    %v227 = vpop.f32.mrb[0].mxu0
    %228 = vmatprep.mubr.f32.mxu0 0.0
    %229 = vmatmul.mubr.f32.gmra.mrb[0].mxu0 %v99
    %v230 = vpop.f32.mrb[0].mxu0
    %v231 = vadd.f32 0.0, %v230
    %v232 = vpop.f32.mrb[0].mxu0
    %233 = vmatprep.mubr.f32.mxu0 0.0
    %234 = vmatmul.mubr.f32.gmra.mrb[0].mxu0 %v102
    %v235 = vpop.f32.mrb[0].mxu0
    %v236 = vadd.f32 0.0, %v235
    %v237 = vpop.f32.mrb[0].mxu0
    %238 = vmatprep.mubr.f32.mxu0 0.0
    %239 = vmatmul.mubr.f32.gmra.mrb[0].mxu0 %v105
    %v240 = vpop.f32.mrb[0].mxu0
    %v241 = vadd.f32 0.0, %v240
    %v242 = vpop.f32.mrb[0].mxu0
    %243 = vmatprep.mubr.f32.mxu0 0.0
    %244 = vmatmul.mubr.f32.gmra.mrb[0].mxu0 %v108
    %v245 = vpop.f32.mrb[0].mxu0
    %v246 = vadd.f32 0.0, %v245
    %v247 = vpop.f32.mrb[0].mxu0
    %248 = vmatprep.mubr.f32.mxu0 0.0
    %249 = vmatmul.mubr.f32.gmra.mrb[0].mxu0 %v111
    %v250 = vpop.f32.mrb[0].mxu0
    %v251 = vadd.f32 0.0, %v250
    %v252 = vpop.f32.mrb[0].mxu0
    %253 = vmatprep.mubr.f32.mxu0 0.0
    %254 = vmatmul.mubr.f32.gmra.mrb[0].mxu0 %v114
    %v255 = vpop.f32.mrb[0].mxu0
    %v256 = vadd.f32 0.0, %v255
    %v257 = vpop.f32.mrb[0].mxu0
    %258 = vmatprep.mubr.f32.mxu0 0.0
    %259 = vmatmul.mubr.f32.gmra.mrb[0].mxu0 %v117
    %v260 = vpop.f32.mrb[0].mxu0
    %v261 = vadd.f32 0.0, %v260
    %v262 = vpop.f32.mrb[0].mxu0
    %263 = vmatprep.mubr.f32.mxu0 0.0
    %264 = vmatmul.mubr.f32.gmra.mrb[0].mxu0 %v120
    %v265 = vpop.f32.mrb[0].mxu0
    %v266 = vadd.f32 0.0, %v265
    %v267 = vpop.f32.mrb[0].mxu0
    %268 = vmatprep.mubr.f32.mxu0 0.0
    %269 = vmatmul.mubr.f32.gmra.mrb[0].mxu0 %v123
    %v270 = vpop.f32.mrb[0].mxu0
    %v271 = vadd.f32 0.0, %v270
    %v272 = vpop.f32.mrb[0].mxu0
    %273 = vdwg.mxu0
    %v274 = vpack.c.bf16 %v201, %v196
    %v275 = vpack.c.bf16 %v211, %v206
    %v276 = vpack.c.bf16 %v221, %v216
    %v277 = vpack.c.bf16 %v231, %v226
    %v278 = vpack.c.bf16 %v241, %v236
    %v279 = vpack.c.bf16 %v251, %v246
    %v280 = vpack.c.bf16 %v261, %v256
    %v281 = vpack.c.bf16 %v271, %v266
    %v282 = vld [vmem:[%s5] sm:$0x1]
    %v284 = vlaneseq
    %v285 = vshrl.u32 %v284, 7
    %v286 = vsub.s32 0, %v285
    %v287 = vrot.slane %v282, %v286
    %v305 = vunpack.c.l.b16 %v43
    %v306 = vunpack.c.l.b16 %v44
    %v307 = vunpack.c.l.b16 %v45
    %v308 = vunpack.c.l.b16 %v46
    %v309 = vunpack.c.l.b16 %v47
    %v310 = vunpack.c.l.b16 %v48
    %v311 = vunpack.c.l.b16 %v49
    %v312 = vunpack.c.l.b16 %v50
    %v313 = vunpack.c.l.b16 %v51
    %v314 = vunpack.c.l.b16 %v52
    %v315 = vunpack.c.l.b16 %v53
    %v316 = vunpack.c.l.b16 %v54
    %v317 = vunpack.c.l.b16 %v55
    %v318 = vunpack.c.l.b16 %v56
    %v319 = vunpack.c.l.b16 %v57
    %v320 = vunpack.c.l.b16 %v58
    %v321 = vpack.c.b16 %v306, %v305
    %v322 = vpack.c.b16 %v308, %v307
    %v323 = vpack.c.b16 %v310, %v309
    %v324 = vpack.c.b16 %v312, %v311
    %v325 = vpack.c.b16 %v314, %v313
    %v326 = vpack.c.b16 %v316, %v315
    %v327 = vpack.c.b16 %v318, %v317
    %v328 = vpack.c.b16 %v320, %v319
    %337 = vmatprep.subr.bf16.mxu0 0
    %338 = vmatpush1.bf16.msra.mxu0 %v274
    %339 = vmatprep.subr.bf16.mxu0 0
    %340 = vmatpush1.bf16.msra.mxu0 %v275
    %341 = vmatprep.subr.bf16.mxu0 0
    %342 = vmatpush1.bf16.msra.mxu0 %v276
    %343 = vmatprep.subr.bf16.mxu0 0
    %344 = vmatpush1.bf16.msra.mxu0 %v277
    %345 = vmatprep.subr.bf16.mxu0 0
    %346 = vmatpush1.bf16.msra.mxu0 %v278
    %347 = vmatprep.subr.bf16.mxu0 0
    %348 = vmatpush1.bf16.msra.mxu0 %v279
    %349 = vmatprep.subr.bf16.mxu0 0
    %350 = vmatpush1.bf16.msra.mxu0 %v280
    %351 = vmatprep.subr.bf16.mxu0 0
    %352 = vmatpush1.bf16.msra.mxu0 %v281
    %353 = vmatprep.subr.bf16.mxu0 0
    %354 = vmatpush1.bf16.msra.mxu0 0
    %355 = vmatprep.subr.bf16.mxu0 0
    %356 = vmatpush1.bf16.msra.mxu0 0
    %357 = vmatprep.subr.bf16.mxu0 0
    %358 = vmatpush1.bf16.msra.mxu0 0
    %359 = vmatprep.subr.bf16.mxu0 0
    %360 = vmatpush1.bf16.msra.mxu0 0
    %361 = vmatprep.subr.bf16.mxu0 0
    %362 = vmatpush1.bf16.msra.mxu0 0
    %363 = vmatprep.subr.bf16.mxu0 0
    %364 = vmatpush1.bf16.msra.mxu0 0
    %365 = vmatprep.subr.bf16.mxu0 0
    %366 = vmatpush1.bf16.msra.mxu0 0
    %367 = vmatprep.subr.bf16.mxu0 0
    %368 = vmatpush1.bf16.msra.mxu0 0
    %369 = vmatprep.mubr.bf16.mxu0 0
    %370 = vmatmul.mubr.bf16.gmra.mrb[0].mxu0 %v321
    %v371 = vpop.f32.mrb[0].mxu0
    %v372 = vadd.f32 %v287, %v371
    %v373 = vpop.f32.mrb[0].mxu0
    %v374 = vpop.f32.mrb[0].mxu0
    %v375 = vadd.f32 %v287, %v374
    %v376 = vpop.f32.mrb[0].mxu0
    %377 = vmatprep.mubr.bf16.mxu0 0
    %378 = vmatmul.mubr.bf16.gmra.mrb[0].mxu0 %v322
    %v379 = vpop.f32.mrb[0].mxu0
    %v380 = vadd.f32 %v287, %v379
    %v381 = vpop.f32.mrb[0].mxu0
    %v382 = vpop.f32.mrb[0].mxu0
    %v383 = vadd.f32 %v287, %v382
    %v384 = vpop.f32.mrb[0].mxu0
    %385 = vmatprep.mubr.bf16.mxu0 0
    %386 = vmatmul.mubr.bf16.gmra.mrb[0].mxu0 %v323
    %v387 = vpop.f32.mrb[0].mxu0
    %v388 = vadd.f32 %v287, %v387
    %v389 = vpop.f32.mrb[0].mxu0
    %v390 = vpop.f32.mrb[0].mxu0
    %v391 = vadd.f32 %v287, %v390
    %v392 = vpop.f32.mrb[0].mxu0
    %393 = vmatprep.mubr.bf16.mxu0 0
    %394 = vmatmul.mubr.bf16.gmra.mrb[0].mxu0 %v324
    %v395 = vpop.f32.mrb[0].mxu0
    %v396 = vadd.f32 %v287, %v395
    %v397 = vpop.f32.mrb[0].mxu0
    %v398 = vpop.f32.mrb[0].mxu0
    %v399 = vadd.f32 %v287, %v398
    %v400 = vpop.f32.mrb[0].mxu0
    %401 = vmatprep.mubr.bf16.mxu0 0
    %402 = vmatmul.mubr.bf16.gmra.mrb[0].mxu0 %v325
    %v403 = vpop.f32.mrb[0].mxu0
    %v404 = vadd.f32 %v287, %v403
    %v405 = vpop.f32.mrb[0].mxu0
    %v406 = vpop.f32.mrb[0].mxu0
    %v407 = vadd.f32 %v287, %v406
    %v408 = vpop.f32.mrb[0].mxu0
    %409 = vmatprep.mubr.bf16.mxu0 0
    %410 = vmatmul.mubr.bf16.gmra.mrb[0].mxu0 %v326
    %v411 = vpop.f32.mrb[0].mxu0
    %v412 = vadd.f32 %v287, %v411
    %v413 = vpop.f32.mrb[0].mxu0
    %v414 = vpop.f32.mrb[0].mxu0
    %v415 = vadd.f32 %v287, %v414
    %v416 = vpop.f32.mrb[0].mxu0
    %417 = vmatprep.mubr.bf16.mxu0 0
    %418 = vmatmul.mubr.bf16.gmra.mrb[0].mxu0 %v327
    %v419 = vpop.f32.mrb[0].mxu0
    %v420 = vadd.f32 %v287, %v419
    %v421 = vpop.f32.mrb[0].mxu0
    %v422 = vpop.f32.mrb[0].mxu0
    %v423 = vadd.f32 %v287, %v422
    %v424 = vpop.f32.mrb[0].mxu0
    %425 = vmatprep.mubr.bf16.mxu0 0
    %426 = vmatmul.mubr.bf16.gmra.mrb[0].mxu0 %v328
    %v427 = vpop.f32.mrb[0].mxu0
    %v428 = vadd.f32 %v287, %v427
    %v429 = vpop.f32.mrb[0].mxu0
    %v430 = vpop.f32.mrb[0].mxu0
    %v431 = vadd.f32 %v287, %v430
    %v432 = vpop.f32.mrb[0].mxu0
    %433 = vdwg.mxu0
    %v434 = vmax.f32 %v372, 0.0
    %v435 = vmax.f32 %v375, 0.0
    %v436 = vmax.f32 %v380, 0.0
    %v437 = vmax.f32 %v383, 0.0
    %v438 = vmax.f32 %v388, 0.0
    %v439 = vmax.f32 %v391, 0.0
    %v440 = vmax.f32 %v396, 0.0
    %v441 = vmax.f32 %v399, 0.0
    %v442 = vmax.f32 %v404, 0.0
    %v443 = vmax.f32 %v407, 0.0
    %v444 = vmax.f32 %v412, 0.0
    %v445 = vmax.f32 %v415, 0.0
    %v446 = vmax.f32 %v420, 0.0
    %v447 = vmax.f32 %v423, 0.0
    %v448 = vmax.f32 %v428, 0.0
    %v449 = vmax.f32 %v431, 0.0
    %v450 = vpack.c.bf16 %v435, %v434
    %v451 = vpack.c.bf16 %v437, %v436
    %v452 = vpack.c.bf16 %v439, %v438
    %v453 = vpack.c.bf16 %v441, %v440
    %v454 = vpack.c.bf16 %v443, %v442
    %v455 = vpack.c.bf16 %v445, %v444
    %v456 = vpack.c.bf16 %v447, %v446
    %v457 = vpack.c.bf16 %v449, %v448
    %v458 = vld [vmem:[%s6] sm:$0xf]
    %v459 = vld [vmem:[%s6 + $0x4] sm:$0xf]
    %v460 = vld [vmem:[%s6 + $0x8] sm:$0xf]
    %v461 = vld [vmem:[%s6 + $0xc] sm:$0xf]
    %v462 = vld [vmem:[%s6 + $0x10] sm:$0xf]
    %v463 = vld [vmem:[%s6 + $0x14] sm:$0xf]
    %v464 = vld [vmem:[%s6 + $0x18] sm:$0xf]
    %v465 = vld [vmem:[%s6 + $0x1c] sm:$0xf]
    %v466 = vld [vmem:[%s6 + $0x20] sm:$0xf]
    %v467 = vld [vmem:[%s6 + $0x24] sm:$0xf]
    %v468 = vld [vmem:[%s6 + $0x28] sm:$0xf]
    %v469 = vld [vmem:[%s6 + $0x2c] sm:$0xf]
    %v470 = vld [vmem:[%s6 + $0x30] sm:$0xf]
    %v471 = vld [vmem:[%s6 + $0x34] sm:$0xf]
    %v472 = vld [vmem:[%s6 + $0x38] sm:$0xf]
    %v473 = vld [vmem:[%s6 + $0x3c] sm:$0xf]
    %v490 = vunpack.c.l.b16 %v458
    %v491 = vunpack.c.l.b16 %v459
    %v492 = vunpack.c.l.b16 %v460
    %v493 = vunpack.c.l.b16 %v461
    %v494 = vunpack.c.l.b16 %v462
    %v495 = vunpack.c.l.b16 %v463
    %v496 = vunpack.c.l.b16 %v464
    %v497 = vunpack.c.l.b16 %v465
    %v498 = vunpack.c.l.b16 %v466
    %v499 = vunpack.c.l.b16 %v467
    %v500 = vunpack.c.l.b16 %v468
    %v501 = vunpack.c.l.b16 %v469
    %v502 = vunpack.c.l.b16 %v470
    %v503 = vunpack.c.l.b16 %v471
    %v504 = vunpack.c.l.b16 %v472
    %v505 = vunpack.c.l.b16 %v473
    %v506 = vpack.c.b16 %v491, %v490
    %v507 = vpack.c.b16 %v493, %v492
    %v508 = vpack.c.b16 %v495, %v494
    %v509 = vpack.c.b16 %v497, %v496
    %v510 = vpack.c.b16 %v499, %v498
    %v511 = vpack.c.b16 %v501, %v500
    %v512 = vpack.c.b16 %v503, %v502
    %v513 = vpack.c.b16 %v505, %v504
    %522 = vmatprep.subr.bf16.mxu0 0
    %523 = vmatpush1.bf16.msra.mxu0 %v506
    %524 = vmatprep.subr.bf16.mxu0 0
    %525 = vmatpush1.bf16.msra.mxu0 %v507
    %526 = vmatprep.subr.bf16.mxu0 0
    %527 = vmatpush1.bf16.msra.mxu0 %v508
    %528 = vmatprep.subr.bf16.mxu0 0
    %529 = vmatpush1.bf16.msra.mxu0 %v509
    %530 = vmatprep.subr.bf16.mxu0 0
    %531 = vmatpush1.bf16.msra.mxu0 %v510
    %532 = vmatprep.subr.bf16.mxu0 0
    %533 = vmatpush1.bf16.msra.mxu0 %v511
    %534 = vmatprep.subr.bf16.mxu0 0
    %535 = vmatpush1.bf16.msra.mxu0 %v512
    %536 = vmatprep.subr.bf16.mxu0 0
    %537 = vmatpush1.bf16.msra.mxu0 %v513
    %538 = vmatprep.subr.bf16.mxu0 0
    %539 = vmatpush1.bf16.msra.mxu0 0
    %540 = vmatprep.subr.bf16.mxu0 0
    %541 = vmatpush1.bf16.msra.mxu0 0
    %542 = vmatprep.subr.bf16.mxu0 0
    %543 = vmatpush1.bf16.msra.mxu0 0
    %544 = vmatprep.subr.bf16.mxu0 0
    %545 = vmatpush1.bf16.msra.mxu0 0
    %546 = vmatprep.subr.bf16.mxu0 0
    %547 = vmatpush1.bf16.msra.mxu0 0
    %548 = vmatprep.subr.bf16.mxu0 0
    %549 = vmatpush1.bf16.msra.mxu0 0
    %550 = vmatprep.subr.bf16.mxu0 0
    %551 = vmatpush1.bf16.msra.mxu0 0
    %552 = vmatprep.subr.bf16.mxu0 0
    %553 = vmatpush1.bf16.msra.mxu0 0
    %554 = vmatprep.mubr.bf16.mxu0 0
    %555 = vmatmul.mubr.bf16.gmra.mrb[0].mxu0 %v450
    %v556 = vpop.f32.mrb[0].mxu0
    %v557 = vadd.f32 0.0, %v556
    %v558 = vpop.f32.mrb[0].mxu0
    %v559 = vpop.f32.mrb[0].mxu0
    %v560 = vadd.f32 0.0, %v559
    %v561 = vpop.f32.mrb[0].mxu0
    %562 = vmatprep.mubr.bf16.mxu0 0
    %563 = vmatmul.mubr.bf16.gmra.mrb[0].mxu0 %v451
    %v564 = vpop.f32.mrb[0].mxu0
    %v565 = vadd.f32 0.0, %v564
    %v566 = vpop.f32.mrb[0].mxu0
    %v567 = vpop.f32.mrb[0].mxu0
    %v568 = vadd.f32 0.0, %v567
    %v569 = vpop.f32.mrb[0].mxu0
    %570 = vmatprep.mubr.bf16.mxu0 0
    %571 = vmatmul.mubr.bf16.gmra.mrb[0].mxu0 %v452
    %v572 = vpop.f32.mrb[0].mxu0
    %v573 = vadd.f32 0.0, %v572
    %v574 = vpop.f32.mrb[0].mxu0
    %v575 = vpop.f32.mrb[0].mxu0
    %v576 = vadd.f32 0.0, %v575
    %v577 = vpop.f32.mrb[0].mxu0
    %578 = vmatprep.mubr.bf16.mxu0 0
    %579 = vmatmul.mubr.bf16.gmra.mrb[0].mxu0 %v453
    %v580 = vpop.f32.mrb[0].mxu0
    %v581 = vadd.f32 0.0, %v580
    %v582 = vpop.f32.mrb[0].mxu0
    %v583 = vpop.f32.mrb[0].mxu0
    %v584 = vadd.f32 0.0, %v583
    %v585 = vpop.f32.mrb[0].mxu0
    %586 = vmatprep.mubr.bf16.mxu0 0
    %587 = vmatmul.mubr.bf16.gmra.mrb[0].mxu0 %v454
    %v588 = vpop.f32.mrb[0].mxu0
    %v589 = vadd.f32 0.0, %v588
    %v590 = vpop.f32.mrb[0].mxu0
    %v591 = vpop.f32.mrb[0].mxu0
    %v592 = vadd.f32 0.0, %v591
    %v593 = vpop.f32.mrb[0].mxu0
    %594 = vmatprep.mubr.bf16.mxu0 0
    %595 = vmatmul.mubr.bf16.gmra.mrb[0].mxu0 %v455
    %v596 = vpop.f32.mrb[0].mxu0
    %v597 = vadd.f32 0.0, %v596
    %v598 = vpop.f32.mrb[0].mxu0
    %v599 = vpop.f32.mrb[0].mxu0
    %v600 = vadd.f32 0.0, %v599
    %v601 = vpop.f32.mrb[0].mxu0
    %602 = vmatprep.mubr.bf16.mxu0 0
    %603 = vmatmul.mubr.bf16.gmra.mrb[0].mxu0 %v456
    %v604 = vpop.f32.mrb[0].mxu0
    %v605 = vadd.f32 0.0, %v604
    %v606 = vpop.f32.mrb[0].mxu0
    %v607 = vpop.f32.mrb[0].mxu0
    %v608 = vadd.f32 0.0, %v607
    %v609 = vpop.f32.mrb[0].mxu0
    %610 = vmatprep.mubr.bf16.mxu0 0
    %611 = vmatmul.mubr.bf16.gmra.mrb[0].mxu0 %v457
    %v612 = vpop.f32.mrb[0].mxu0
    %v613 = vadd.f32 0.0, %v612
    %v614 = vpop.f32.mrb[0].mxu0
    %v615 = vpop.f32.mrb[0].mxu0
    %v616 = vadd.f32 0.0, %v615
    %v617 = vpop.f32.mrb[0].mxu0
    %618 = vdwg.mxu0
    %v619 = vpack.c.bf16 %v560, %v557
    %v620 = vpack.c.bf16 %v568, %v565
    %v621 = vpack.c.bf16 %v576, %v573
    %v622 = vpack.c.bf16 %v584, %v581
    %v623 = vpack.c.bf16 %v592, %v589
    %v624 = vpack.c.bf16 %v600, %v597
    %v625 = vpack.c.bf16 %v608, %v605
    %v626 = vpack.c.bf16 %v616, %v613
    %v627 = vld [vmem:[%s7] sm:$0x1]
    %v629 = vlaneseq
    %v630 = vshrl.u32 %v629, 7
    %v631 = vsub.s32 0, %v630
    %v632 = vrot.slane %v627, %v631
    %634 = vmatprep.subr.bf16.mxu0 0
    %635 = vmatpush1.bf16.msra.mxu0 %v619
    %636 = vmatprep.subr.bf16.mxu0 0
    %637 = vmatpush1.bf16.msra.mxu0 %v620
    %638 = vmatprep.subr.bf16.mxu0 0
    %639 = vmatpush1.bf16.msra.mxu0 %v621
    %640 = vmatprep.subr.bf16.mxu0 0
    %641 = vmatpush1.bf16.msra.mxu0 %v622
    %642 = vmatprep.subr.bf16.mxu0 0
    %643 = vmatpush1.bf16.msra.mxu0 %v623
    %644 = vmatprep.subr.bf16.mxu0 0
    %645 = vmatpush1.bf16.msra.mxu0 %v624
    %646 = vmatprep.subr.bf16.mxu0 0
    %647 = vmatpush1.bf16.msra.mxu0 %v625
    %648 = vmatprep.subr.bf16.mxu0 0
    %649 = vmatpush1.bf16.msra.mxu0 %v626
    %650 = vmatprep.subr.bf16.mxu0 0
    %651 = vmatpush1.bf16.msra.mxu0 0
    %652 = vmatprep.subr.bf16.mxu0 0
    %653 = vmatpush1.bf16.msra.mxu0 0
    %654 = vmatprep.subr.bf16.mxu0 0
    %655 = vmatpush1.bf16.msra.mxu0 0
    %656 = vmatprep.subr.bf16.mxu0 0
    %657 = vmatpush1.bf16.msra.mxu0 0
    %658 = vmatprep.subr.bf16.mxu0 0
    %659 = vmatpush1.bf16.msra.mxu0 0
    %660 = vmatprep.subr.bf16.mxu0 0
    %661 = vmatpush1.bf16.msra.mxu0 0
    %662 = vmatprep.subr.bf16.mxu0 0
    %663 = vmatpush1.bf16.msra.mxu0 0
    %664 = vmatprep.subr.bf16.mxu0 0
    %665 = vmatpush1.bf16.msra.mxu0 0
    %666 = vmatprep.mubr.bf16.mxu0 0
    %667 = vmatmul.mubr.bf16.gmra.mrb[0].mxu0 %v321
    %v668 = vpop.f32.mrb[0].mxu0
    %v669 = vadd.f32 %v632, %v668
    %v670 = vpop.f32.mrb[0].mxu0
    %v671 = vpop.f32.mrb[0].mxu0
    %v672 = vadd.f32 %v632, %v671
    %v673 = vpop.f32.mrb[0].mxu0
    %674 = vmatprep.mubr.bf16.mxu0 0
    %675 = vmatmul.mubr.bf16.gmra.mrb[0].mxu0 %v322
    %v676 = vpop.f32.mrb[0].mxu0
    %v677 = vadd.f32 %v632, %v676
    %v678 = vpop.f32.mrb[0].mxu0
    %v679 = vpop.f32.mrb[0].mxu0
    %v680 = vadd.f32 %v632, %v679
    %v681 = vpop.f32.mrb[0].mxu0
    %682 = vmatprep.mubr.bf16.mxu0 0
    %683 = vmatmul.mubr.bf16.gmra.mrb[0].mxu0 %v323
    %v684 = vpop.f32.mrb[0].mxu0
    %v685 = vadd.f32 %v632, %v684
    %v686 = vpop.f32.mrb[0].mxu0
    %v687 = vpop.f32.mrb[0].mxu0
    %v688 = vadd.f32 %v632, %v687
    %v689 = vpop.f32.mrb[0].mxu0
    %690 = vmatprep.mubr.bf16.mxu0 0
    %691 = vmatmul.mubr.bf16.gmra.mrb[0].mxu0 %v324
    %v692 = vpop.f32.mrb[0].mxu0
    %v693 = vadd.f32 %v632, %v692
    %v694 = vpop.f32.mrb[0].mxu0
    %v695 = vpop.f32.mrb[0].mxu0
    %v696 = vadd.f32 %v632, %v695
    %v697 = vpop.f32.mrb[0].mxu0
    %698 = vmatprep.mubr.bf16.mxu0 0
    %699 = vmatmul.mubr.bf16.gmra.mrb[0].mxu0 %v325
    %v700 = vpop.f32.mrb[0].mxu0
    %v701 = vadd.f32 %v632, %v700
    %v702 = vpop.f32.mrb[0].mxu0
    %v703 = vpop.f32.mrb[0].mxu0
    %v704 = vadd.f32 %v632, %v703
    %v705 = vpop.f32.mrb[0].mxu0
    %706 = vmatprep.mubr.bf16.mxu0 0
    %707 = vmatmul.mubr.bf16.gmra.mrb[0].mxu0 %v326
    %v708 = vpop.f32.mrb[0].mxu0
    %v709 = vadd.f32 %v632, %v708
    %v710 = vpop.f32.mrb[0].mxu0
    %v711 = vpop.f32.mrb[0].mxu0
    %v712 = vadd.f32 %v632, %v711
    %v713 = vpop.f32.mrb[0].mxu0
    %714 = vmatprep.mubr.bf16.mxu0 0
    %715 = vmatmul.mubr.bf16.gmra.mrb[0].mxu0 %v327
    %v716 = vpop.f32.mrb[0].mxu0
    %v717 = vadd.f32 %v632, %v716
    %v718 = vpop.f32.mrb[0].mxu0
    %v719 = vpop.f32.mrb[0].mxu0
    %v720 = vadd.f32 %v632, %v719
    %v721 = vpop.f32.mrb[0].mxu0
    %722 = vmatprep.mubr.bf16.mxu0 0
    %723 = vmatmul.mubr.bf16.gmra.mrb[0].mxu0 %v328
    %v724 = vpop.f32.mrb[0].mxu0
    %v725 = vadd.f32 %v632, %v724
    %v726 = vpop.f32.mrb[0].mxu0
    %v727 = vpop.f32.mrb[0].mxu0
    %v728 = vadd.f32 %v632, %v727
    %v729 = vpop.f32.mrb[0].mxu0
    %730 = vdwg.mxu0
    %v731 = vmax.f32 %v669, 0.0
    %v732 = vmax.f32 %v672, 0.0
    %v733 = vmax.f32 %v677, 0.0
    %v734 = vmax.f32 %v680, 0.0
    %v735 = vmax.f32 %v685, 0.0
    %v736 = vmax.f32 %v688, 0.0
    %v737 = vmax.f32 %v693, 0.0
    %v738 = vmax.f32 %v696, 0.0
    %v739 = vmax.f32 %v701, 0.0
    %v740 = vmax.f32 %v704, 0.0
    %v741 = vmax.f32 %v709, 0.0
    %v742 = vmax.f32 %v712, 0.0
    %v743 = vmax.f32 %v717, 0.0
    %v744 = vmax.f32 %v720, 0.0
    %v745 = vmax.f32 %v725, 0.0
    %v746 = vmax.f32 %v728, 0.0
    %v747 = vpack.c.bf16 %v732, %v731
    %v748 = vpack.c.bf16 %v734, %v733
    %v749 = vpack.c.bf16 %v736, %v735
    %v750 = vpack.c.bf16 %v738, %v737
    %v751 = vpack.c.bf16 %v740, %v739
    %v752 = vpack.c.bf16 %v742, %v741
    %v753 = vpack.c.bf16 %v744, %v743
    %v754 = vpack.c.bf16 %v746, %v745
    %v755 = vld [vmem:[%s8] sm:$0xf]
    %v756 = vld [vmem:[%s8 + $0x4] sm:$0xf]
    %v757 = vld [vmem:[%s8 + $0x8] sm:$0xf]
    %v758 = vld [vmem:[%s8 + $0xc] sm:$0xf]
    %v759 = vld [vmem:[%s8 + $0x10] sm:$0xf]
    %v760 = vld [vmem:[%s8 + $0x14] sm:$0xf]
    %v761 = vld [vmem:[%s8 + $0x18] sm:$0xf]
    %v762 = vld [vmem:[%s8 + $0x1c] sm:$0xf]
    %v763 = vld [vmem:[%s8 + $0x20] sm:$0xf]
    %v764 = vld [vmem:[%s8 + $0x24] sm:$0xf]
    %v765 = vld [vmem:[%s8 + $0x28] sm:$0xf]
    %v766 = vld [vmem:[%s8 + $0x2c] sm:$0xf]
    %v767 = vld [vmem:[%s8 + $0x30] sm:$0xf]
    %v768 = vld [vmem:[%s8 + $0x34] sm:$0xf]
    %v769 = vld [vmem:[%s8 + $0x38] sm:$0xf]
    %v770 = vld [vmem:[%s8 + $0x3c] sm:$0xf]
    %v787 = vunpack.c.l.b16 %v755
    %v788 = vunpack.c.l.b16 %v756
    %v789 = vunpack.c.l.b16 %v757
    %v790 = vunpack.c.l.b16 %v758
    %v791 = vunpack.c.l.b16 %v759
    %v792 = vunpack.c.l.b16 %v760
    %v793 = vunpack.c.l.b16 %v761
    %v794 = vunpack.c.l.b16 %v762
    %v795 = vunpack.c.l.b16 %v763
    %v796 = vunpack.c.l.b16 %v764
    %v797 = vunpack.c.l.b16 %v765
    %v798 = vunpack.c.l.b16 %v766
    %v799 = vunpack.c.l.b16 %v767
    %v800 = vunpack.c.l.b16 %v768
    %v801 = vunpack.c.l.b16 %v769
    %v802 = vunpack.c.l.b16 %v770
    %v803 = vpack.c.b16 %v788, %v787
    %v804 = vpack.c.b16 %v790, %v789
    %v805 = vpack.c.b16 %v792, %v791
    %v806 = vpack.c.b16 %v794, %v793
    %v807 = vpack.c.b16 %v796, %v795
    %v808 = vpack.c.b16 %v798, %v797
    %v809 = vpack.c.b16 %v800, %v799
    %v810 = vpack.c.b16 %v802, %v801
    %819 = vmatprep.subr.bf16.mxu0 0
    %820 = vmatpush1.bf16.msra.mxu0 %v803
    %821 = vmatprep.subr.bf16.mxu0 0
    %822 = vmatpush1.bf16.msra.mxu0 %v804
    %823 = vmatprep.subr.bf16.mxu0 0
    %824 = vmatpush1.bf16.msra.mxu0 %v805
    %825 = vmatprep.subr.bf16.mxu0 0
    %826 = vmatpush1.bf16.msra.mxu0 %v806
    %827 = vmatprep.subr.bf16.mxu0 0
    %828 = vmatpush1.bf16.msra.mxu0 %v807
    %829 = vmatprep.subr.bf16.mxu0 0
    %830 = vmatpush1.bf16.msra.mxu0 %v808
    %831 = vmatprep.subr.bf16.mxu0 0
    %832 = vmatpush1.bf16.msra.mxu0 %v809
    %833 = vmatprep.subr.bf16.mxu0 0
    %834 = vmatpush1.bf16.msra.mxu0 %v810
    %835 = vmatprep.subr.bf16.mxu0 0
    %836 = vmatpush1.bf16.msra.mxu0 0
    %837 = vmatprep.subr.bf16.mxu0 0
    %838 = vmatpush1.bf16.msra.mxu0 0
    %839 = vmatprep.subr.bf16.mxu0 0
    %840 = vmatpush1.bf16.msra.mxu0 0
    %841 = vmatprep.subr.bf16.mxu0 0
    %842 = vmatpush1.bf16.msra.mxu0 0
    %843 = vmatprep.subr.bf16.mxu0 0
    %844 = vmatpush1.bf16.msra.mxu0 0
    %845 = vmatprep.subr.bf16.mxu0 0
    %846 = vmatpush1.bf16.msra.mxu0 0
    %847 = vmatprep.subr.bf16.mxu0 0
    %848 = vmatpush1.bf16.msra.mxu0 0
    %849 = vmatprep.subr.bf16.mxu0 0
    %850 = vmatpush1.bf16.msra.mxu0 0
    %851 = vmatprep.mubr.bf16.mxu0 0
    %852 = vmatmul.mubr.bf16.gmra.mrb[0].mxu0 %v747
    %v853 = vpop.f32.mrb[0].mxu0
    %v854 = vadd.f32 0.0, %v853
    %v855 = vpop.f32.mrb[0].mxu0
    %v856 = vpop.f32.mrb[0].mxu0
    %v857 = vadd.f32 0.0, %v856
    %v858 = vpop.f32.mrb[0].mxu0
    %859 = vmatprep.mubr.bf16.mxu0 0
    %860 = vmatmul.mubr.bf16.gmra.mrb[0].mxu0 %v748
    %v861 = vpop.f32.mrb[0].mxu0
    %v862 = vadd.f32 0.0, %v861
    %v863 = vpop.f32.mrb[0].mxu0
    %v864 = vpop.f32.mrb[0].mxu0
    %v865 = vadd.f32 0.0, %v864
    %v866 = vpop.f32.mrb[0].mxu0
    %867 = vmatprep.mubr.bf16.mxu0 0
    %868 = vmatmul.mubr.bf16.gmra.mrb[0].mxu0 %v749
    %v869 = vpop.f32.mrb[0].mxu0
    %v870 = vadd.f32 0.0, %v869
    %v871 = vpop.f32.mrb[0].mxu0
    %v872 = vpop.f32.mrb[0].mxu0
    %v873 = vadd.f32 0.0, %v872
    %v874 = vpop.f32.mrb[0].mxu0
    %875 = vmatprep.mubr.bf16.mxu0 0
    %876 = vmatmul.mubr.bf16.gmra.mrb[0].mxu0 %v750
    %v877 = vpop.f32.mrb[0].mxu0
    %v878 = vadd.f32 0.0, %v877
    %v879 = vpop.f32.mrb[0].mxu0
    %v880 = vpop.f32.mrb[0].mxu0
    %v881 = vadd.f32 0.0, %v880
    %v882 = vpop.f32.mrb[0].mxu0
    %883 = vmatprep.mubr.bf16.mxu0 0
    %884 = vmatmul.mubr.bf16.gmra.mrb[0].mxu0 %v751
    %v885 = vpop.f32.mrb[0].mxu0
    %v886 = vadd.f32 0.0, %v885
    %v887 = vpop.f32.mrb[0].mxu0
    %v888 = vpop.f32.mrb[0].mxu0
    %v889 = vadd.f32 0.0, %v888
    %v890 = vpop.f32.mrb[0].mxu0
    %891 = vmatprep.mubr.bf16.mxu0 0
    %892 = vmatmul.mubr.bf16.gmra.mrb[0].mxu0 %v752
    %v893 = vpop.f32.mrb[0].mxu0
    %v894 = vadd.f32 0.0, %v893
    %v895 = vpop.f32.mrb[0].mxu0
    %v896 = vpop.f32.mrb[0].mxu0
    %v897 = vadd.f32 0.0, %v896
    %v898 = vpop.f32.mrb[0].mxu0
    %899 = vmatprep.mubr.bf16.mxu0 0
    %900 = vmatmul.mubr.bf16.gmra.mrb[0].mxu0 %v753
    %v901 = vpop.f32.mrb[0].mxu0
    %v902 = vadd.f32 0.0, %v901
    %v903 = vpop.f32.mrb[0].mxu0
    %v904 = vpop.f32.mrb[0].mxu0
    %v905 = vadd.f32 0.0, %v904
    %v906 = vpop.f32.mrb[0].mxu0
    %907 = vmatprep.mubr.bf16.mxu0 0
    %908 = vmatmul.mubr.bf16.gmra.mrb[0].mxu0 %v754
    %v909 = vpop.f32.mrb[0].mxu0
    %v910 = vadd.f32 0.0, %v909
    %v911 = vpop.f32.mrb[0].mxu0
    %v912 = vpop.f32.mrb[0].mxu0
    %v913 = vadd.f32 0.0, %v912
    %v914 = vpop.f32.mrb[0].mxu0
    %915 = vdwg.mxu0
    %v916 = vpack.c.bf16 %v857, %v854
    %v917 = vpack.c.bf16 %v865, %v862
    %v918 = vpack.c.bf16 %v873, %v870
    %v919 = vpack.c.bf16 %v881, %v878
    %v920 = vpack.c.bf16 %v889, %v886
    %v921 = vpack.c.bf16 %v897, %v894
    %v922 = vpack.c.bf16 %v905, %v902
    %v923 = vpack.c.bf16 %v913, %v910
    %v924 = vld [vmem:[%s9] sm:$0x1]
    %v926 = vlaneseq
    %v927 = vshrl.u32 %v926, 7
    %v928 = vsub.s32 0, %v927
    %v929 = vrot.slane %v924, %v928
    %931 = vmatprep.subr.bf16.mxu0 0
    %932 = vmatpush1.bf16.msra.mxu0 %v916
    %933 = vmatprep.subr.bf16.mxu0 0
    %934 = vmatpush1.bf16.msra.mxu0 %v917
    %935 = vmatprep.subr.bf16.mxu0 0
    %936 = vmatpush1.bf16.msra.mxu0 %v918
    %937 = vmatprep.subr.bf16.mxu0 0
    %938 = vmatpush1.bf16.msra.mxu0 %v919
    %939 = vmatprep.subr.bf16.mxu0 0
    %940 = vmatpush1.bf16.msra.mxu0 %v920
    %941 = vmatprep.subr.bf16.mxu0 0
    %942 = vmatpush1.bf16.msra.mxu0 %v921
    %943 = vmatprep.subr.bf16.mxu0 0
    %944 = vmatpush1.bf16.msra.mxu0 %v922
    %945 = vmatprep.subr.bf16.mxu0 0
    %946 = vmatpush1.bf16.msra.mxu0 %v923
    %947 = vmatprep.subr.bf16.mxu0 0
    %948 = vmatpush1.bf16.msra.mxu0 0
    %949 = vmatprep.subr.bf16.mxu0 0
    %950 = vmatpush1.bf16.msra.mxu0 0
    %951 = vmatprep.subr.bf16.mxu0 0
    %952 = vmatpush1.bf16.msra.mxu0 0
    %953 = vmatprep.subr.bf16.mxu0 0
    %954 = vmatpush1.bf16.msra.mxu0 0
    %955 = vmatprep.subr.bf16.mxu0 0
    %956 = vmatpush1.bf16.msra.mxu0 0
    %957 = vmatprep.subr.bf16.mxu0 0
    %958 = vmatpush1.bf16.msra.mxu0 0
    %959 = vmatprep.subr.bf16.mxu0 0
    %960 = vmatpush1.bf16.msra.mxu0 0
    %961 = vmatprep.subr.bf16.mxu0 0
    %962 = vmatpush1.bf16.msra.mxu0 0
    %963 = vmatprep.mubr.bf16.mxu0 0
    %964 = vmatmul.mubr.bf16.gmra.mrb[0].mxu0 %v321
    %v965 = vpop.f32.mrb[0].mxu0
    %v966 = vadd.f32 %v929, %v965
    %v967 = vpop.f32.mrb[0].mxu0
    %v968 = vpop.f32.mrb[0].mxu0
    %v969 = vadd.f32 %v929, %v968
    %v970 = vpop.f32.mrb[0].mxu0
    %971 = vmatprep.mubr.bf16.mxu0 0
    %972 = vmatmul.mubr.bf16.gmra.mrb[0].mxu0 %v322
    %v973 = vpop.f32.mrb[0].mxu0
    %v974 = vadd.f32 %v929, %v973
    %v975 = vpop.f32.mrb[0].mxu0
    %v976 = vpop.f32.mrb[0].mxu0
    %v977 = vadd.f32 %v929, %v976
    %v978 = vpop.f32.mrb[0].mxu0
    %979 = vmatprep.mubr.bf16.mxu0 0
    %980 = vmatmul.mubr.bf16.gmra.mrb[0].mxu0 %v323
    %v981 = vpop.f32.mrb[0].mxu0
    %v982 = vadd.f32 %v929, %v981
    %v983 = vpop.f32.mrb[0].mxu0
    %v984 = vpop.f32.mrb[0].mxu0
    %v985 = vadd.f32 %v929, %v984
    %v986 = vpop.f32.mrb[0].mxu0
    %987 = vmatprep.mubr.bf16.mxu0 0
    %988 = vmatmul.mubr.bf16.gmra.mrb[0].mxu0 %v324
    %v989 = vpop.f32.mrb[0].mxu0
    %v990 = vadd.f32 %v929, %v989
    %v991 = vpop.f32.mrb[0].mxu0
    %v992 = vpop.f32.mrb[0].mxu0
    %v993 = vadd.f32 %v929, %v992
    %v994 = vpop.f32.mrb[0].mxu0
    %995 = vmatprep.mubr.bf16.mxu0 0
    %996 = vmatmul.mubr.bf16.gmra.mrb[0].mxu0 %v325
    %v997 = vpop.f32.mrb[0].mxu0
    %v998 = vadd.f32 %v929, %v997
    %v999 = vpop.f32.mrb[0].mxu0
    %v1000 = vpop.f32.mrb[0].mxu0
    %v1001 = vadd.f32 %v929, %v1000
    %v1002 = vpop.f32.mrb[0].mxu0
    %1003 = vmatprep.mubr.bf16.mxu0 0
    %1004 = vmatmul.mubr.bf16.gmra.mrb[0].mxu0 %v326
    %v1005 = vpop.f32.mrb[0].mxu0
    %v1006 = vadd.f32 %v929, %v1005
    %v1007 = vpop.f32.mrb[0].mxu0
    %v1008 = vpop.f32.mrb[0].mxu0
    %v1009 = vadd.f32 %v929, %v1008
    %v1010 = vpop.f32.mrb[0].mxu0
    %1011 = vmatprep.mubr.bf16.mxu0 0
    %1012 = vmatmul.mubr.bf16.gmra.mrb[0].mxu0 %v327
    %v1013 = vpop.f32.mrb[0].mxu0
    %v1014 = vadd.f32 %v929, %v1013
    %v1015 = vpop.f32.mrb[0].mxu0
    %v1016 = vpop.f32.mrb[0].mxu0
    %v1017 = vadd.f32 %v929, %v1016
    %v1018 = vpop.f32.mrb[0].mxu0
    %1019 = vmatprep.mubr.bf16.mxu0 0
    %1020 = vmatmul.mubr.bf16.gmra.mrb[0].mxu0 %v328
    %v1021 = vpop.f32.mrb[0].mxu0
    %v1022 = vadd.f32 %v929, %v1021
    %v1023 = vpop.f32.mrb[0].mxu0
    %v1024 = vpop.f32.mrb[0].mxu0
    %v1025 = vadd.f32 %v929, %v1024
    %v1026 = vpop.f32.mrb[0].mxu0
    %1027 = vdwg.mxu0
    %v1028 = vld [vmem:[%s2] sm:$0x3]
    %1029 = vmatprep.subr.mxu0 0.0
    %1030 = vmatpush1.msra.mxu0 %v966
    %1031 = vmatprep.subr.mxu0 0.0
    %1032 = vmatpush1.msra.mxu0 %v969
    %1033 = vmatprep.subr.mxu0 0.0
    %1034 = vmatpush1.msra.mxu0 %v974
    %1035 = vmatprep.subr.mxu0 0.0
    %1036 = vmatpush1.msra.mxu0 %v977
    %1037 = vmatprep.subr.mxu0 0.0
    %1038 = vmatpush1.msra.mxu0 %v982
    %1039 = vmatprep.subr.mxu0 0.0
    %1040 = vmatpush1.msra.mxu0 %v985
    %1041 = vmatprep.subr.mxu0 0.0
    %1042 = vmatpush1.msra.mxu0 %v990
    %1043 = vmatprep.subr.mxu0 0.0
    %1044 = vmatpush1.msra.mxu0 %v993
    %1045 = vmatprep.subr.mxu0 0.0
    %1046 = vmatpush1.msra.mxu0 %v998
    %1047 = vmatprep.subr.mxu0 0.0
    %1048 = vmatpush1.msra.mxu0 %v1001
    %1049 = vmatprep.subr.mxu0 0.0
    %1050 = vmatpush1.msra.mxu0 %v1006
    %1051 = vmatprep.subr.mxu0 0.0
    %1052 = vmatpush1.msra.mxu0 %v1009
    %1053 = vmatprep.subr.mxu0 0.0
    %1054 = vmatpush1.msra.mxu0 %v1014
    %1055 = vmatprep.subr.mxu0 0.0
    %1056 = vmatpush1.msra.mxu0 %v1017
    %1057 = vmatprep.subr.mxu0 0.0
    %1058 = vmatpush1.msra.mxu0 %v1022
    %1059 = vmatprep.subr.mxu0 0.0
    %1060 = vmatpush1.msra.mxu0 %v1025
    %1061 = vmatprep.subr.mxu0 0.0
    %1062 = vmatpush1.msra.mxu0 0.0
    %1063 = vmatprep.subr.mxu0 0.0
    %1064 = vmatpush1.msra.mxu0 0.0
    %1065 = vmatprep.subr.mxu0 0.0
    %1066 = vmatpush1.msra.mxu0 0.0
    %1067 = vmatprep.subr.mxu0 0.0
    %1068 = vmatpush1.msra.mxu0 0.0
    %1069 = vmatprep.subr.mxu0 0.0
    %1070 = vmatpush1.msra.mxu0 0.0
    %1071 = vmatprep.subr.mxu0 0.0
    %1072 = vmatpush1.msra.mxu0 0.0
    %1073 = vmatprep.subr.mxu0 0.0
    %1074 = vmatpush1.msra.mxu0 0.0
    %1075 = vmatprep.subr.mxu0 0.0
    %1076 = vmatpush1.msra.mxu0 0.0
    %1077 = vmatprep.subr.mxu0 0.0
    %1078 = vmatpush1.msra.mxu0 0.0
    %1079 = vmatprep.subr.mxu0 0.0
    %1080 = vmatpush1.msra.mxu0 0.0
    %1081 = vmatprep.subr.mxu0 0.0
    %1082 = vmatpush1.msra.mxu0 0.0
    %1083 = vmatprep.subr.mxu0 0.0
    %1084 = vmatpush1.msra.mxu0 0.0
    %1085 = vmatprep.subr.mxu0 0.0
    %1086 = vmatpush1.msra.mxu0 0.0
    %1087 = vmatprep.subr.mxu0 0.0
    %1088 = vmatpush1.msra.mxu0 0.0
    %1089 = vmatprep.subr.mxu0 0.0
    %1090 = vmatpush1.msra.mxu0 0.0
    %1091 = vmatprep.subr.mxu0 0.0
    %1092 = vmatpush1.msra.mxu0 0.0
    %1093 = vmatprep.mubr.f32.mxu0 0.0
    %1094 = vmatmul.mubr.f32.gmra.mrb[0].mxu0 %v1028
    %v1095 = vpop.f32.mrb[0].mxu0
    %v1096 = vadd.f32 0.0, %v1095
    %v1097 = vpop.f32.mrb[0].mxu0
    %1098 = vdwg.mxu0
    %v1099 = vld [vmem:[%s3] sm:$0x3]
    %1101 = vset.pattern.permute.xlu0 0
    %1102 = vperm.xlu0 %1101, %v1099
    %v1103 = vpop.permute.xlu0 %1102
    %v1105 = vmul.f32 %v1096, %v1103
    %v1106 = vld [vmem:[%s10] sm:$0xff]
    %v1107 = vld [vmem:[%s10 + $0x8] sm:$0xff]
    %v1108 = vld [vmem:[%s10 + $0x10] sm:$0xff]
    %v1109 = vld [vmem:[%s10 + $0x18] sm:$0xff]
    %v1110 = vld [vmem:[%s10 + $0x20] sm:$0xff]
    %v1111 = vld [vmem:[%s10 + $0x28] sm:$0xff]
    %v1112 = vld [vmem:[%s10 + $0x30] sm:$0xff]
    %v1113 = vld [vmem:[%s10 + $0x38] sm:$0xff]
    %v1114 = vld [vmem:[%s10 + $0x40] sm:$0xff]
    %v1115 = vld [vmem:[%s10 + $0x48] sm:$0xff]
    %v1116 = vld [vmem:[%s10 + $0x50] sm:$0xff]
    %v1117 = vld [vmem:[%s10 + $0x58] sm:$0xff]
    %v1118 = vld [vmem:[%s10 + $0x60] sm:$0xff]
    %v1119 = vld [vmem:[%s10 + $0x68] sm:$0xff]
    %v1120 = vld [vmem:[%s10 + $0x70] sm:$0xff]
    %v1121 = vld [vmem:[%s10 + $0x78] sm:$0xff]
    %v1122 = vld [vmem:[%s11] sm:$0x1]
    %v1124 = vlaneseq
    %v1125 = vshrl.u32 %v1124, 7
    %v1126 = vsub.s32 0, %v1125
    %v1127 = vrot.slane %v1122, %v1126
    %1129 = vmatprep.subr.mxu0 0.0
    %1130 = vmatpush1.msra.mxu0 %v1106
    %1131 = vmatprep.subr.mxu0 0.0
    %1132 = vmatpush1.msra.mxu0 %v1107
    %1133 = vmatprep.subr.mxu0 0.0
    %1134 = vmatpush1.msra.mxu0 %v1108
    %1135 = vmatprep.subr.mxu0 0.0
    %1136 = vmatpush1.msra.mxu0 %v1109
    %1137 = vmatprep.subr.mxu0 0.0
    %1138 = vmatpush1.msra.mxu0 %v1110
    %1139 = vmatprep.subr.mxu0 0.0
    %1140 = vmatpush1.msra.mxu0 %v1111
    %1141 = vmatprep.subr.mxu0 0.0
    %1142 = vmatpush1.msra.mxu0 %v1112
    %1143 = vmatprep.subr.mxu0 0.0
    %1144 = vmatpush1.msra.mxu0 %v1113
    %1145 = vmatprep.subr.mxu0 0.0
    %1146 = vmatpush1.msra.mxu0 %v1114
    %1147 = vmatprep.subr.mxu0 0.0
    %1148 = vmatpush1.msra.mxu0 %v1115
    %1149 = vmatprep.subr.mxu0 0.0
    %1150 = vmatpush1.msra.mxu0 %v1116
    %1151 = vmatprep.subr.mxu0 0.0
    %1152 = vmatpush1.msra.mxu0 %v1117
    %1153 = vmatprep.subr.mxu0 0.0
    %1154 = vmatpush1.msra.mxu0 %v1118
    %1155 = vmatprep.subr.mxu0 0.0
    %1156 = vmatpush1.msra.mxu0 %v1119
    %1157 = vmatprep.subr.mxu0 0.0
    %1158 = vmatpush1.msra.mxu0 %v1120
    %1159 = vmatprep.subr.mxu0 0.0
    %1160 = vmatpush1.msra.mxu0 %v1121
    %1161 = vmatprep.subr.mxu0 0.0
    %1162 = vmatpush1.msra.mxu0 0.0
    %1163 = vmatprep.subr.mxu0 0.0
    %1164 = vmatpush1.msra.mxu0 0.0
    %1165 = vmatprep.subr.mxu0 0.0
    %1166 = vmatpush1.msra.mxu0 0.0
    %1167 = vmatprep.subr.mxu0 0.0
    %1168 = vmatpush1.msra.mxu0 0.0
    %1169 = vmatprep.subr.mxu0 0.0
    %1170 = vmatpush1.msra.mxu0 0.0
    %1171 = vmatprep.subr.mxu0 0.0
    %1172 = vmatpush1.msra.mxu0 0.0
    %1173 = vmatprep.subr.mxu0 0.0
    %1174 = vmatpush1.msra.mxu0 0.0
    %1175 = vmatprep.subr.mxu0 0.0
    %1176 = vmatpush1.msra.mxu0 0.0
    %1177 = vmatprep.subr.mxu0 0.0
    %1178 = vmatpush1.msra.mxu0 0.0
    %1179 = vmatprep.subr.mxu0 0.0
    %1180 = vmatpush1.msra.mxu0 0.0
    %1181 = vmatprep.subr.mxu0 0.0
    %1182 = vmatpush1.msra.mxu0 0.0
    %1183 = vmatprep.subr.mxu0 0.0
    %1184 = vmatpush1.msra.mxu0 0.0
    %1185 = vmatprep.subr.mxu0 0.0
    %1186 = vmatpush1.msra.mxu0 0.0
    %1187 = vmatprep.subr.mxu0 0.0
    %1188 = vmatpush1.msra.mxu0 0.0
    %1189 = vmatprep.subr.mxu0 0.0
    %1190 = vmatpush1.msra.mxu0 0.0
    %1191 = vmatprep.subr.mxu0 0.0
    %1192 = vmatpush1.msra.mxu0 0.0
    %1193 = vmatprep.mubr.f32.mxu0 0.0
    %1194 = vmatmul.mubr.f32.gmra.mrb[0].mxu0 %v1105
    %v1195 = vpop.f32.mrb[0].mxu0
    %v1196 = vadd.f32 %v1127, %v1195
    %v1197 = vpop.f32.mrb[0].mxu0
    %1198 = vdwg.mxu0
    %vm1199 = vcmask 9216
    %1200 = vst.msk [vmem:[#allocation2] sm:$0x3] %vm1199, %v1196
    // Predicated region
    $region50: #{gcn_forward.1} parent=1 // pred_check
      _
    $region51: #{gcn_forward.1} parent=1 // pred_check_branch
      %1202 = sbr.rel (0) target = $region53
    $region52: #{gcn_forward.1} parent=1 // pred_region
      %s1204 = ssub.s32 32, 32
      %1205 = vsyncadd [#allocation3], %s1204
      %s1207 = sshll.u32 [#allocation2], 4
      %s1208 = int_to_ptr.vmem [resolvable:$true] %s1207
      %1210 = dma.vmem_to_hbm [thread:$0]  %s1208, 32, %s12, [#allocation3]
    $region53: #{gcn_forward.1} parent=1 // pred_fallthru
      _
    // Predicated region
    $region54: #{gcn_forward.1} parent=1 // pred_check
      _
    $region55: #{gcn_forward.1} parent=1 // pred_check_branch
      %1212 = sbr.rel (0) target = $region57
    $region56: #{gcn_forward.1} parent=1 // pred_region
      %1213 = dma.done [#allocation3], 32
    $region57: #{gcn_forward.1} parent=1 // pred_fallthru
      _
    %1214 = vsyncpa [#allocation3], 1

</llo_original>
